<compile_context>
chip_gen: v7x
topology: tpu7x:2x2x1
jax: 0.10.0
libtpu: 0.0.40
codegen_flags: <defaults>
</compile_context>

<pallas_src>
import functools
import math

import jax
import jax.numpy as jnp
from jax.experimental import pallas as pl
from jax.experimental.pallas import tpu as pltpu


def build_position_encoding_table(dim_model: int, max_seq_len: int) -> jnp.ndarray:
    """Raw sinusoid table, identical to the PyTorch buffer (glue, plain JAX)."""
    po = jnp.arange(max_seq_len, dtype=jnp.float32)[:, None]              # [L_max, 1]
    div_term = jnp.exp(
        jnp.arange(0.0, dim_model, 2.0, dtype=jnp.float32)
        * -(math.log(10000.0) / dim_model)
    )                                                                     # [D//2]
    pe = jnp.zeros((max_seq_len, dim_model), dtype=jnp.float32)
    pe = pe.at[:, 0::2].set(jnp.sin(po * div_term))
    pe = pe.at[:, 1::2].set(jnp.cos(po * div_term))
    return pe


def _pos_enc_kernel(x_ref, pe_ref, o_ref, *, n_batch: int):
    # x_ref / o_ref : [tl, N*D]    pe_ref : [tl, D]  (already divided by sqrt(D))
    pe = pe_ref[...]
    if n_batch > 1:
        # Lane-replicate pe over the batch: column c of the 2-D slab is
        # (n = c // D, d = c % D), and the added value depends only on d.
        pe = jnp.concatenate([pe] * n_batch, axis=-1)                     # [tl, N*D]
    o_ref[...] = (x_ref[...].astype(jnp.float32) + pe).astype(o_ref.dtype)


def _choose_seq_tile(L: int, row_bytes: int, sublane: int,
                     target_block_bytes: int = 1 << 20, min_steps: int = 8) -> int:
    """Sequence tile: sublane-aligned, >= ~min_steps grid steps when L allows,
    and <= ~1 MiB per x block so double-buffering fits v7x scoped VMEM."""
    if L <= sublane:
        return L
    tl = min(L, max(sublane, target_block_bytes // max(row_bytes, 1)))
    tl = min(tl, max(sublane, L // min_steps))
    return max(sublane, (tl // sublane) * sublane)


def position_encoding_forward(x: jnp.ndarray, pe_scaled: jnp.ndarray) -> jnp.ndarray:
    """x: [L, N, D], pe_scaled: [L_max, D] (= pe / sqrt(D)) -> [L, N, D]."""
    L, N, D = x.shape
    l_max, d_pe = pe_scaled.shape
    if d_pe != D:
        raise ValueError(f"pe dim_model {d_pe} != x feature dim {D}")
    if L > l_max:
        raise ValueError(f"sequence length {L} exceeds max_seq_len {l_max}")

    pe_s = pe_scaled[:L, :].astype(jnp.float32)      # static slice of the buffer
    nd = N * D
    x2d = x.reshape(L, nd)                           # free view: merge trailing dims

    itemsize = jnp.dtype(x.dtype).itemsize
    sublane = max(8, 32 // itemsize)                 # 8 for f32, 16 for bf16
    tl = _choose_seq_tile(L, nd * itemsize, sublane)
    grid = (pl.cdiv(L, tl),)

    out2d = pl.pallas_call(
        functools.partial(_pos_enc_kernel, n_batch=N),
        out_shape=jax.ShapeDtypeStruct((L, nd), x.dtype),
        grid_spec=pltpu.PrefetchScalarGridSpec(
            num_scalar_prefetch=0,
            grid=grid,
            in_specs=[
                pl.BlockSpec((tl, nd), lambda i: (i, 0)),   # x slab (lane-dense)
                pl.BlockSpec((tl, D), lambda i: (i, 0)),    # tiny pe tile
            ],
            out_specs=pl.BlockSpec((tl, nd), lambda i: (i, 0)),
        ),
        compiler_params=pltpu.CompilerParams(
            dimension_semantics=("parallel",),
        ),
        input_output_aliases={0: 0},                 # write back into x's buffer
        cost_estimate=pl.CostEstimate(
            flops=L * N * D,
            transcendentals=0,
            bytes_accessed=2 * L * N * D * itemsize + L * D * 4,
        ),
    )(x2d, pe_s)

    return out2d.reshape(L, N, D)


if __name__ == "__main__":
    # Small shapes consistent with the module's [L, N, dim] convention, large
    # enough that the sequence axis actually tiles (grid of 8 steps here).
    L, N, D = 64, 4, 128
    max_seq_len = 128

    key = jax.random.PRNGKey(0)
    x = jax.random.normal(key, (L, N, D), dtype=jnp.float32)

    pe = build_position_encoding_table(dim_model=D, max_seq_len=max_seq_len)
    pe_scaled = pe / math.sqrt(D)     # init-time fold of the forward-pass division

    # Reference (pure JAX, exact PyTorch op order) computed BEFORE donating x.
    ref = x + pe[:L, :][:, None, :] / math.sqrt(D)

    forward = jax.jit(position_encoding_forward, donate_argnums=(0,))
    out = jax.block_until_ready(forward(x, pe_scaled))

    assert out.shape == (L, N, D)
    assert jnp.allclose(out, ref, atol=1e-6, rtol=1e-6)

    print("KERNEL_OK")
</pallas_src>

<mosaic_0001>
module attributes {stable_mosaic.version = 11 : i64} {
  func.func @_pos_enc_kernel(%arg0: i32, %arg1: memref<8x512xf32, #tpu.memory_space<vmem>>, %arg2: memref<8x128xf32, #tpu.memory_space<vmem>>, %arg3: memref<8x512xf32, #tpu.memory_space<vmem>>) attributes {dimension_semantics = [#tpu.dimension_semantics<parallel>], iteration_bounds = array<i64: 8>, scalar_prefetch = 0 : i64, scratch_operands = 0 : i64, tpu.core_type = #tpu.core_type<tc>, window_params = [{transform_indices = @transform_0, window_bounds = array<i64: 8, 512>}, {transform_indices = @transform_1, window_bounds = array<i64: 8, 128>}, {transform_indices = @transform_2, window_bounds = array<i64: 8, 512>}]} {
    %c0 = arith.constant 0 : index
    %c0_0 = arith.constant 0 : index
    %0 = vector.load %arg2[%c0, %c0_0] : memref<8x128xf32, #tpu.memory_space<vmem>>, vector<8x128xf32>
    %1 = tpu.concatenate %0, %0, %0, %0 in 1 : vector<8x128xf32>, vector<8x128xf32>, vector<8x128xf32>, vector<8x128xf32> -> vector<8x512xf32>
    %c0_1 = arith.constant 0 : index
    %c0_2 = arith.constant 0 : index
    %2 = vector.load %arg1[%c0_1, %c0_2] : memref<8x512xf32, #tpu.memory_space<vmem>>, vector<8x512xf32>
    %3 = arith.addf %2, %1 : vector<8x512xf32>
    %c0_3 = arith.constant 0 : index
    %c0_4 = arith.constant 0 : index
    %4 = vector.load %arg3[%c0_3, %c0_4] : memref<8x512xf32, #tpu.memory_space<vmem>>, vector<8x512xf32>
    tpu.vector_store %arg3[%c0_3, %c0_4], %3 {strides = array<i32>} : memref<8x512xf32, #tpu.memory_space<vmem>>, vector<8x512xf32>,
    return
  }
  func.func @transform_0(%arg0: i32) -> (i32, i32) {
    %c0_i32 = arith.constant 0 : i32
    %c0_i32_0 = arith.constant 0 : i32
    return %arg0, %c0_i32 : i32, i32
  }
  func.func @transform_1(%arg0: i32) -> (i32, i32) {
    %c0_i32 = arith.constant 0 : i32
    %c0_i32_0 = arith.constant 0 : i32
    return %arg0, %c0_i32 : i32, i32
  }
  func.func @transform_2(%arg0: i32) -> (i32, i32) {
    %c0_i32 = arith.constant 0 : i32
    %c0_i32_0 = arith.constant 0 : i32
    return %arg0, %c0_i32 : i32, i32
  }
}

</mosaic_0001>

<llo_original>
// kernel: position_encoding_forward.1
$region0: #{position_encoding_forward.1}
  #allocation0 [shape = 'u32[]', space=smem, size = 0x4, offset = 0x4, fixed_abs, tag = 'smem constant byte address 0x4 - core index']
  #allocation1 [shape = 'u32[144,128]{1,0:T(1,128)}', space=vmem, size = 0x12000, scoped, tag = 'internal scratch']
  %s0 = inlined_call_operand.vmem [shape: f32[64,512], index: 0, kind: input, shape index: {}, may-alias: {0,2}]
  %s1 = inlined_call_operand.vmem [shape: f32[64,128], index: 1, kind: input, shape index: {}]
  %s2 = inlined_call_operand.vmem [shape: f32[64,512], index: 2, kind: output, shape index: {}, may-alias: {0,2}]
  %s3 = sld [smem:[#allocation0]]
  $region41: #{position_encoding_forward.1} parent=0
    _
  %s5 = ssub.s32 1, %s3
  %s6 = scalar_select 0, %s5, %s3
  loop: start=0, step=1, limit=10
  $region2: #{position_encoding_forward.1} parent=0 // loop_pre_header
    _
  $region3: #{position_encoding_forward.1} parent=0 // loop_header
    %s8 = sphi 0, %s12
    %p9 = scmp.ge.s32.totalorder %s8, 10
    %s18 = sphi 0, %s20
    %s21 = sphi 0, %s18
    %s22 = sphi 0, %s21
    %s38 = sphi 0, %s22
    %s44 = sphi 0, %s46
    %s47 = sphi 0, %s44
    %s48 = sphi 0, %s47
    %s64 = sphi 0, %s48
    %s70 = sphi 0, %s72
    %s73 = sphi 0, %s70
    %s74 = sphi 0, %s73
    %s90 = sphi 0, %s74
  $region4: #{position_encoding_forward.1} parent=0 // loop_header_branch
    %11 = sbr.rel (%p9) target = $region8
  $region5: #{position_encoding_forward.1} parent=0 // loop_body
    %s13 = ssub.s32 %s8, 1
    %s14 = ssub.s32 %s8, 2
    %s15 = sadd.s32 %s8, 1
    %s16 = ssub.s32 %s8, %s15
    %p17 = scmp.eq.s32.totalorder %s16, 0
    %s19 = sadd.s32 %s18, 1
    %s20 = scalar_select %p17, %s18, %s19
    %p23 = pneg %p17
    %p24 = scmp.eq.s32.totalorder %s8, 7
    %p25 = por %p23, %p24
    %p26 = scmp.ne.s32.totalorder %s18, %s21
    %p27 = scmp.eq.s32.totalorder %s8, 0
    %p28 = por %p26, %p27
    %p29 = scmp.ne.s32.totalorder %s18, %s21
    %p30 = scmp.eq.s32.totalorder %s13, 7
    %p31 = por %p29, %p30
    %p32 = scmp.ne.s32.totalorder %s21, %s22
    %p33 = scmp.eq.s32.totalorder %s13, 0
    %p34 = por %p32, %p33
    %p35 = scmp.ne.s32.totalorder %s21, %s22
    %p36 = scmp.eq.s32.totalorder %s14, 7
    %p37 = por %p35, %p36
    %p39 = scmp.ne.s32.totalorder %s22, %s38
    %p40 = scmp.eq.s32.totalorder %s14, 0
    %p41 = por %p39, %p40
    %s42 = ssub.s32 %s8, %s15
    %p43 = scmp.eq.s32.totalorder %s42, 0
    %s45 = sadd.s32 %s44, 1
    %s46 = scalar_select %p43, %s44, %s45
    %p49 = pneg %p43
    %p50 = scmp.eq.s32.totalorder %s8, 7
    %p51 = por %p49, %p50
    %p52 = scmp.ne.s32.totalorder %s44, %s47
    %p53 = scmp.eq.s32.totalorder %s8, 0
    %p54 = por %p52, %p53
    %p55 = scmp.ne.s32.totalorder %s44, %s47
    %p56 = scmp.eq.s32.totalorder %s13, 7
    %p57 = por %p55, %p56
    %p58 = scmp.ne.s32.totalorder %s47, %s48
    %p59 = scmp.eq.s32.totalorder %s13, 0
    %p60 = por %p58, %p59
    %p61 = scmp.ne.s32.totalorder %s47, %s48
    %p62 = scmp.eq.s32.totalorder %s14, 7
    %p63 = por %p61, %p62
    %p65 = scmp.ne.s32.totalorder %s48, %s64
    %p66 = scmp.eq.s32.totalorder %s14, 0
    %p67 = por %p65, %p66
    %s68 = ssub.s32 %s8, %s15
    %p69 = scmp.eq.s32.totalorder %s68, 0
    %s71 = sadd.s32 %s70, 1
    %s72 = scalar_select %p69, %s70, %s71
    %p75 = pneg %p69
    %p76 = scmp.eq.s32.totalorder %s8, 7
    %p77 = por %p75, %p76
    %p78 = scmp.ne.s32.totalorder %s70, %s73
    %p79 = scmp.eq.s32.totalorder %s8, 0
    %p80 = por %p78, %p79
    %p81 = scmp.ne.s32.totalorder %s70, %s73
    %p82 = scmp.eq.s32.totalorder %s13, 7
    %p83 = por %p81, %p82
    %p84 = scmp.ne.s32.totalorder %s73, %s74
    %p85 = scmp.eq.s32.totalorder %s13, 0
    %p86 = por %p84, %p85
    %p87 = scmp.ne.s32.totalorder %s73, %s74
    %p88 = scmp.eq.s32.totalorder %s14, 7
    %p89 = por %p87, %p88
    %p91 = scmp.ne.s32.totalorder %s74, %s90
    %p92 = scmp.eq.s32.totalorder %s14, 0
    %p93 = por %p91, %p92
    %p94 = scmp.le.s32.totalorder 1, %s8
    %p95 = scmp.lt.s32.totalorder %s8, 9
    %p96 = pnand %p94, %p95
    %p97 = pneg %p96
    // Predicated region
    $region9: #{position_encoding_forward.1} parent=5 // pred_check
      _
    $region10: #{position_encoding_forward.1} parent=5 // pred_check_branch
      %99 = sbr.rel (%p96) target = $region12
    $region11: #{position_encoding_forward.1} parent=5 // pred_region
      %s100 = ssub.s32 %s8, 1
    $region12: #{position_encoding_forward.1} parent=5 // pred_fallthru
      _
    %p101 = scmp.lt.s32.totalorder %s8, 8
    // Predicated region
    $region13: #{position_encoding_forward.1} parent=5 // pred_check
      %p102 = pneg %p101
    $region14: #{position_encoding_forward.1} parent=5 // pred_check_branch
      %104 = sbr.rel (%p102) target = $region16
    $region15: #{position_encoding_forward.1} parent=5 // pred_region
      // Predicated region
      $region17: #{position_encoding_forward.1} parent=15 // pred_check
        %p105 = pneg %p28
      $region18: #{position_encoding_forward.1} parent=15 // pred_check_branch
        %107 = sbr.rel (%p105) target = $region20
      $region19: #{position_encoding_forward.1} parent=15 // pred_region
        %p108 = scmp.lt.s32.totalorder %s8, 7
        %s109 = scalar_select %p108, %s8, 7
        %s110 = smul.addr %s109, 4
        %s111 = smul.addr %s110, 8
        %s112 = scalar_lea.vmem %s0, %s111
      $region20: #{position_encoding_forward.1} parent=15 // pred_fallthru
        _
      // Predicated region
      $region21: #{position_encoding_forward.1} parent=15 // pred_check
        %p113 = pneg %p54
      $region22: #{position_encoding_forward.1} parent=15 // pred_check_branch
        %115 = sbr.rel (%p113) target = $region24
      $region23: #{position_encoding_forward.1} parent=15 // pred_region
        %p116 = scmp.lt.s32.totalorder %s8, 7
        %s117 = scalar_select %p116, %s8, 7
        %s118 = smul.addr %s117, 8
        %s119 = scalar_lea.vmem %s1, %s118
      $region24: #{position_encoding_forward.1} parent=15 // pred_fallthru
        _
    $region16: #{position_encoding_forward.1} parent=5 // pred_fallthru
      _
    %p120 = scmp.le.s32.totalorder 1, %s8
    %p121 = scmp.lt.s32.totalorder %s8, 9
    %p122 = pnand %p120, %p121
    %p123 = pneg %p122
    // Predicated region
    $region25: #{position_encoding_forward.1} parent=5 // pred_check
      _
    $region26: #{position_encoding_forward.1} parent=5 // pred_check_branch
      %125 = sbr.rel (%p122) target = $region28
    $region27: #{position_encoding_forward.1} parent=5 // pred_region
      %s126 = ssub.s32 %s8, 1
      %p127 = scmp.lt.s32.totalorder %s13, 7
      %s128 = scalar_select %p127, %s13, 7
      %s129 = smul.addr %s128, 4
      %s130 = smul.addr %s129, 8
      %s131 = scalar_lea.vmem %s0, %s130
      %p132 = pneg %p34
      %p133 = pneg %p31
      %p134 = scmp.lt.s32.totalorder %s13, 7
      %s135 = scalar_select %p134, %s13, 7
      %s136 = smul.addr %s135, 8
      %s137 = scalar_lea.vmem %s1, %s136
      %p138 = pneg %p60
      %p139 = pneg %p57
      %p140 = pneg %p86
      %p141 = pneg %p83
      %p142 = scmp.lt.s32.totalorder %s13, 7
      %s143 = scalar_select %p142, %s13, 7
      %s144 = smul.addr %s143, 4
      %s145 = smul.addr %s144, 8
      %s146 = scalar_lea.vmem %s2, %s145
      %p147 = scmp.lt.s32.totalorder %s13, 7
      %s148 = scalar_select %p147, %s13, 7
      %s149 = smul.addr %s148, 4
      %s150 = smul.addr %s149, 8
      %s151 = scalar_lea.vmem %s0, %s150
      %p152 = scmp.lt.s32.totalorder %s13, 7
      %s153 = scalar_select %p152, %s13, 7
      %s154 = smul.addr %s153, 8
      %s155 = scalar_lea.vmem %s1, %s154
      %p156 = scmp.lt.s32.totalorder %s13, 7
      %s157 = scalar_select %p156, %s13, 7
      %s158 = smul.addr %s157, 4
      %s159 = smul.addr %s158, 8
      %s160 = scalar_lea.vmem %s2, %s159
      %v161 = vld [vmem:[%s155] sm:$0xff]
      %v162 = vld [vmem:[%s151] sm:$0xff]
      %v163 = vld [vmem:[%s151 + $0x8] sm:$0xff]
      %v164 = vld [vmem:[%s151 + $0x10] sm:$0xff]
      %v165 = vld [vmem:[%s151 + $0x18] sm:$0xff]
      %v166 = vadd.f32 %v162, %v161
      %v167 = vadd.f32 %v163, %v161
      %v168 = vadd.f32 %v164, %v161
      %v169 = vadd.f32 %v165, %v161
      %170 = vst [vmem:[%s160] sm:$0xff] %v166
      %171 = vst [vmem:[%s160 + $0x8] sm:$0xff] %v167
      %172 = vst [vmem:[%s160 + $0x10] sm:$0xff] %v168
      %173 = vst [vmem:[%s160 + $0x18] sm:$0xff] %v169
      %p174 = scmp.lt.s32.totalorder %s13, 7
      %s175 = scalar_select %p174, %s13, 7
      %s176 = smul.addr %s175, 4
      %s177 = smul.addr %s176, 8
      %s178 = scalar_lea.vmem %s2, %s177
      // Predicated region
      $region29: #{position_encoding_forward.1} parent=27 // pred_check
        %p179 = pneg %p83
      $region30: #{position_encoding_forward.1} parent=27 // pred_check_branch
        %181 = sbr.rel (%p179) target = $region32
      $region31: #{position_encoding_forward.1} parent=27 // pred_region
        _
      $region32: #{position_encoding_forward.1} parent=27 // pred_fallthru
        _
    $region28: #{position_encoding_forward.1} parent=5 // pred_fallthru
      _
    %p182 = scmp.le.s32.totalorder 2, %s8
    // Predicated region
    $region33: #{position_encoding_forward.1} parent=5 // pred_check
      %p183 = pneg %p182
    $region34: #{position_encoding_forward.1} parent=5 // pred_check_branch
      %185 = sbr.rel (%p183) target = $region36
    $region35: #{position_encoding_forward.1} parent=5 // pred_region
      %s186 = ssub.s32 %s8, 2
      // Predicated region
      $region37: #{position_encoding_forward.1} parent=35 // pred_check
        %p187 = pneg %p89
      $region38: #{position_encoding_forward.1} parent=35 // pred_check_branch
        %189 = sbr.rel (%p187) target = $region40
      $region39: #{position_encoding_forward.1} parent=35 // pred_region
        %p190 = scmp.lt.s32.totalorder %s14, 7
        %s191 = scalar_select %p190, %s14, 7
        %s192 = smul.addr %s191, 4
        %s193 = smul.addr %s192, 8
        %s194 = scalar_lea.vmem %s2, %s193
      $region40: #{position_encoding_forward.1} parent=35 // pred_fallthru
        _
    $region36: #{position_encoding_forward.1} parent=5 // pred_fallthru
      _
  $region6: #{position_encoding_forward.1} parent=0 // loop_footer
    %s12 = sadd.s32 1, %s8
  $region7: #{position_encoding_forward.1} parent=0 // loop_footer_branch
    %7 = sbr.rel target = $region3
  $region8: #{position_encoding_forward.1} parent=0 // loop_exit
    _

</llo_original>
